<compile_context>
chip_gen: v5e
topology: v5e:2x2
jax: 0.10.0
libtpu: 0.0.40
codegen_flags: <defaults>
</compile_context>

<pallas_src>
import jax
import jax.numpy as jnp
from jax import lax
from jax.experimental import pallas as pl
from jax.experimental.pallas import tpu as pltpu


def rnn_fused_kernel(ids_ref,    # VMEM [S*B, 1] int32 token ids (time-major flatten)
                     len_ref,    # VMEM [B, 1]   int32 sequence lengths
                     emb_ref,    # VMEM [V, E]   embedding table (pad_idx row is zero)
                     wih_ref,    # VMEM [E, H]   W_ih^T
                     whh_ref,    # VMEM [H, H]   W_hh^T
                     b_ref,      # VMEM [1, H]   b_ih + b_hh
                     wfc_ref,    # VMEM [H, O]   W_fc^T
                     bfc_ref,    # VMEM [1, O]   b_fc
                     out_ref):   # VMEM [B, O]
    SB = ids_ref.shape[0]
    V, _ = emb_ref.shape
    H = whh_ref.shape[1]
    B = len_ref.shape[0]
    S = SB // B

    # --- Prologue: fused embedding gather + input projection.
    # table_proj[v] = emb_table[v] @ W_ih; the gather is a one-hot matmul against it.
    # pad_idx row of emb_table is zero, so padded tokens contribute only the bias,
    # which the per-step validity mask below discards anyway.
    table_proj = jnp.dot(emb_ref[...], wih_ref[...],
                         preferred_element_type=jnp.float32)           # [V, H]
    onehot = (ids_ref[...] ==
              lax.broadcasted_iota(jnp.int32, (SB, V), 1)).astype(jnp.float32)  # [S*B, V]
    xproj = (jnp.dot(onehot, table_proj, preferred_element_type=jnp.float32)
             + b_ref[...])                                              # [S*B, H]

    # Clamp lengths to S (defensive: an out-of-range length can then never select a
    # non-existent timestep) and derive max_len in-kernel for the epilogue mask.
    lens = jnp.minimum(len_ref[...], S)                                 # [B, 1]
    w_hh = whh_ref[...]

    # --- Recurrence: static, fully unrolled; one small matmul + tanh + select per step.
    h = jnp.zeros((B, H), jnp.float32)
    for t in range(S):
        x_t = xproj[t * B:(t + 1) * B, :]                               # static slice [B, H]
        h_new = jnp.tanh(x_t + jnp.dot(h, w_hh,
                                       preferred_element_type=jnp.float32))
        h = jnp.where(t < lens, h_new, h)                               # packed-seq step mask

    # --- Epilogue: pad_packed_sequence's output[-1][b] is zero unless
    #     length[b] == max(lengths); fc(0) = bias for the shorter sequences.
    max_len = jnp.max(lens)
    final = jnp.where(lens == max_len, h, 0.0)                          # [B, H]
    out_ref[...] = (jnp.dot(final, wfc_ref[...],
                            preferred_element_type=jnp.float32)
                    + bfc_ref[...])


def multiclass_rnn_forward(text, text_length, params):
    """text: [S, B] int32 token ids; text_length: [B] int32."""
    emb_table, w_ih, w_hh, b, w_fc, b_fc = params
    S, B = text.shape
    V, E = emb_table.shape
    H = w_hh.shape[0]
    O = w_fc.shape[1]

    # Bitcast-compatible reshapes only (no gather, no max) -> zero-cost wrapper glue.
    ids2d = text.astype(jnp.int32).reshape(S * B, 1)     # time-major flatten
    lens2d = text_length.astype(jnp.int32).reshape(B, 1)

    return pl.pallas_call(
        rnn_fused_kernel,
        out_shape=jax.ShapeDtypeStruct((B, O), jnp.float32),
        grid=(1,),                                       # single fused invocation
        in_specs=[
            pl.BlockSpec((S * B, 1), lambda i: (0, 0)),  # token ids
            pl.BlockSpec((B, 1), lambda i: (0, 0)),      # lengths
            pl.BlockSpec((V, E), lambda i: (0, 0)),      # embedding table
            pl.BlockSpec((E, H), lambda i: (0, 0)),      # W_ih^T
            pl.BlockSpec((H, H), lambda i: (0, 0)),      # W_hh^T
            pl.BlockSpec((1, H), lambda i: (0, 0)),      # b_ih + b_hh
            pl.BlockSpec((H, O), lambda i: (0, 0)),      # W_fc^T
            pl.BlockSpec((1, O), lambda i: (0, 0)),      # b_fc
        ],
        out_specs=pl.BlockSpec((B, O), lambda i: (0, 0)),
        compiler_params=pltpu.CompilerParams(
            dimension_semantics=("arbitrary",)),
    )(ids2d, lens2d, emb_table, w_ih, w_hh, b, w_fc, b_fc)


def reference_forward(text, text_length, params):
    """Pure-JAX reference mirroring the PyTorch packed-RNN semantics."""
    emb_table, w_ih, w_hh, b, w_fc, b_fc = params
    embedded = jnp.take(emb_table, text, axis=0)      # [S, B, E]
    S, B, _ = embedded.shape
    H = w_hh.shape[0]
    h = jnp.zeros((B, H), jnp.float32)
    for t in range(S):
        h_new = jnp.tanh(embedded[t] @ w_ih + h @ w_hh + b)
        valid = (t < text_length)[:, None]
        h = jnp.where(valid, h_new, h)
    max_len = jnp.max(text_length)
    final = jnp.where((text_length == max_len)[:, None], h, 0.0)
    return final @ w_fc + b_fc


def init_params(key, vocab_size, embedding_dim, hidden_dim, output_dim, pad_idx):
    ks = jax.random.split(key, 6)
    emb_table = 0.1 * jax.random.normal(ks[0], (vocab_size, embedding_dim), jnp.float32)
    emb_table = emb_table.at[pad_idx].set(0.0)   # padding_idx row is zero
    w_ih = 0.1 * jax.random.normal(ks[1], (embedding_dim, hidden_dim), jnp.float32)
    w_hh = 0.1 * jax.random.normal(ks[2], (hidden_dim, hidden_dim), jnp.float32)
    b_ih = 0.1 * jax.random.normal(ks[3], (hidden_dim,), jnp.float32)
    b_hh = 0.1 * jax.random.normal(ks[4], (hidden_dim,), jnp.float32)
    b = (b_ih + b_hh)[None, :]                   # [1, H]
    w_fc = 0.1 * jax.random.normal(ks[5], (hidden_dim, output_dim), jnp.float32)
    b_fc = 0.05 * jnp.ones((1, output_dim), jnp.float32)
    return (emb_table, w_ih, w_hh, b, w_fc, b_fc)


if __name__ == "__main__":
    vocab_size, embedding_dim, hidden_dim, output_dim, pad_idx = 32, 16, 32, 8, 0
    S, B = 8, 8

    key = jax.random.PRNGKey(0)
    kp, kt = jax.random.split(key)
    params = init_params(kp, vocab_size, embedding_dim, hidden_dim, output_dim, pad_idx)

    # Deterministic variable-length batch; positions beyond each length hold pad_idx.
    text_length = jnp.array([8, 5, 3, 8, 2, 7, 8, 4], dtype=jnp.int32)   # [B]
    tokens = jax.random.randint(kt, (S, B), 1, vocab_size, dtype=jnp.int32)
    step_ids = jnp.arange(S, dtype=jnp.int32)[:, None]                   # [S, 1]
    text = jnp.where(step_ids < text_length[None, :], tokens, pad_idx)   # [S, B]

    out = multiclass_rnn_forward(text, text_length, params)
    out = jax.block_until_ready(out)

    ref = reference_forward(text, text_length, params)
    assert out.shape == (B, output_dim)
    assert jnp.allclose(out, ref, atol=1e-2, rtol=1e-2), (out, ref)

    print("KERNEL_OK")
</pallas_src>

<mosaic_0001>
module attributes {stable_mosaic.version = 11 : i64} {
  func.func @rnn_fused_kernel(%arg0: i32, %arg1: memref<64x1xi32, #tpu.memory_space<vmem>>, %arg2: memref<8x1xi32, #tpu.memory_space<vmem>>, %arg3: memref<32x16xf32, #tpu.memory_space<vmem>>, %arg4: memref<16x32xf32, #tpu.memory_space<vmem>>, %arg5: memref<32x32xf32, #tpu.memory_space<vmem>>, %arg6: memref<1x32xf32, #tpu.memory_space<vmem>>, %arg7: memref<32x8xf32, #tpu.memory_space<vmem>>, %arg8: memref<1x8xf32, #tpu.memory_space<vmem>>, %arg9: memref<8x8xf32, #tpu.memory_space<vmem>>) attributes {dimension_semantics = [#tpu.dimension_semantics<arbitrary>], iteration_bounds = array<i64: 1>, scalar_prefetch = 0 : i64, scratch_operands = 0 : i64, tpu.core_type = #tpu.core_type<tc>, window_params = [{pipeline_mode = #tpu.pipeline_mode<synchronous>, transform_indices = @transform_0, window_bounds = array<i64: 64, 1>}, {pipeline_mode = #tpu.pipeline_mode<synchronous>, transform_indices = @transform_1, window_bounds = array<i64: 8, 1>}, {pipeline_mode = #tpu.pipeline_mode<synchronous>, transform_indices = @transform_2, window_bounds = array<i64: 32, 16>}, {pipeline_mode = #tpu.pipeline_mode<synchronous>, transform_indices = @transform_3, window_bounds = array<i64: 16, 32>}, {pipeline_mode = #tpu.pipeline_mode<synchronous>, transform_indices = @transform_4, window_bounds = array<i64: 32, 32>}, {pipeline_mode = #tpu.pipeline_mode<synchronous>, transform_indices = @transform_5, window_bounds = array<i64: 1, 32>}, {pipeline_mode = #tpu.pipeline_mode<synchronous>, transform_indices = @transform_6, window_bounds = array<i64: 32, 8>}, {pipeline_mode = #tpu.pipeline_mode<synchronous>, transform_indices = @transform_7, window_bounds = array<i64: 1, 8>}, {pipeline_mode = #tpu.pipeline_mode<synchronous>, transform_indices = @transform_8, window_bounds = array<i64: 8, 8>}]} {
    %c0 = arith.constant 0 : index
    %c0_0 = arith.constant 0 : index
    %0 = vector.load %arg3[%c0, %c0_0] : memref<32x16xf32, #tpu.memory_space<vmem>>, vector<32x16xf32>
    %c0_1 = arith.constant 0 : index
    %c0_2 = arith.constant 0 : index
    %1 = vector.load %arg4[%c0_1, %c0_2] : memref<16x32xf32, #tpu.memory_space<vmem>>, vector<16x32xf32>
    %cst = arith.constant dense<0.000000e+00> : vector<32x32xf32>
    %2 = tpu.matmul %0, %1, %cst {dimension_numbers = #tpu.dot_dimension_numbers<[1], [0], [0], [1], [0, 0, 1, 1], [], []>} : vector<32x16xf32>, vector<16x32xf32>, vector<32x32xf32> -> vector<32x32xf32>
    %c0_3 = arith.constant 0 : index
    %c0_4 = arith.constant 0 : index
    %3 = vector.load %arg1[%c0_3, %c0_4] : memref<64x1xi32, #tpu.memory_space<vmem>>, vector<64x1xi32>
    %4 = tpu.iota {dimensions = array<i32: 1>} : vector<64x32xi32>
    %5 = vector.broadcast %3 : vector<64x1xi32> to vector<64x32xi32>
    %6 = arith.cmpi eq, %5, %4 : vector<64x32xi32>
    %7 = arith.extui %6 : vector<64x32xi1> to vector<64x32xi32>
    %8 = arith.sitofp %7 : vector<64x32xi32> to vector<64x32xf32>
    %cst_5 = arith.constant dense<0.000000e+00> : vector<64x32xf32>
    %9 = tpu.matmul %8, %2, %cst_5 {dimension_numbers = #tpu.dot_dimension_numbers<[1], [0], [0], [1], [0, 0, 1, 1], [], []>} : vector<64x32xf32>, vector<32x32xf32>, vector<64x32xf32> -> vector<64x32xf32>
    %c0_6 = arith.constant 0 : index
    %c0_7 = arith.constant 0 : index
    %10 = vector.load %arg6[%c0_6, %c0_7] : memref<1x32xf32, #tpu.memory_space<vmem>>, vector<1x32xf32>
    %11 = vector.broadcast %10 : vector<1x32xf32> to vector<64x32xf32>
    %12 = arith.addf %9, %11 : vector<64x32xf32>
    %c0_8 = arith.constant 0 : index
    %c0_9 = arith.constant 0 : index
    %13 = vector.load %arg2[%c0_8, %c0_9] : memref<8x1xi32, #tpu.memory_space<vmem>>, vector<8x1xi32>
    %c8_i32 = arith.constant 8 : i32
    %14 = vector.broadcast %c8_i32 : i32 to vector<8x1xi32>
    %15 = arith.minsi %13, %14 : vector<8x1xi32>
    %c0_10 = arith.constant 0 : index
    %c0_11 = arith.constant 0 : index
    %16 = vector.load %arg5[%c0_10, %c0_11] : memref<32x32xf32, #tpu.memory_space<vmem>>, vector<32x32xf32>
    %cst_12 = arith.constant 0.000000e+00 : f32
    %17 = vector.broadcast %cst_12 : f32 to vector<8x32xf32>
    %18 = vector.extract_strided_slice %12 {offsets = [0, 0], sizes = [8, 32], strides = [1, 1]} : vector<64x32xf32> to vector<8x32xf32>
    %cst_13 = arith.constant dense<0.000000e+00> : vector<8x32xf32>
    %19 = tpu.matmul %17, %16, %cst_13 {dimension_numbers = #tpu.dot_dimension_numbers<[1], [0], [0], [1], [0, 0, 1, 1], [], []>} : vector<8x32xf32>, vector<32x32xf32>, vector<8x32xf32> -> vector<8x32xf32>
    %20 = arith.addf %18, %19 : vector<8x32xf32>
    %21 = math.tanh %20 : vector<8x32xf32>
    %c0_i32 = arith.constant 0 : i32
    %22 = vector.broadcast %c0_i32 : i32 to vector<8x1xi32>
    %23 = arith.cmpi sgt, %15, %22 : vector<8x1xi32>
    %24 = vector.shape_cast %23 : vector<8x1xi1> to vector<8x1xi1>
    %25 = vector.broadcast %24 : vector<8x1xi1> to vector<8x32xi1>
    %26 = arith.select %25, %21, %17 : vector<8x32xi1>, vector<8x32xf32>
    %27 = vector.extract_strided_slice %12 {offsets = [8, 0], sizes = [8, 32], strides = [1, 1]} : vector<64x32xf32> to vector<8x32xf32>
    %cst_14 = arith.constant dense<0.000000e+00> : vector<8x32xf32>
    %28 = tpu.matmul %26, %16, %cst_14 {dimension_numbers = #tpu.dot_dimension_numbers<[1], [0], [0], [1], [0, 0, 1, 1], [], []>} : vector<8x32xf32>, vector<32x32xf32>, vector<8x32xf32> -> vector<8x32xf32>
    %29 = arith.addf %27, %28 : vector<8x32xf32>
    %30 = math.tanh %29 : vector<8x32xf32>
    %c1_i32 = arith.constant 1 : i32
    %31 = vector.broadcast %c1_i32 : i32 to vector<8x1xi32>
    %32 = arith.cmpi sgt, %15, %31 : vector<8x1xi32>
    %33 = vector.shape_cast %32 : vector<8x1xi1> to vector<8x1xi1>
    %34 = vector.broadcast %33 : vector<8x1xi1> to vector<8x32xi1>
    %35 = arith.select %34, %30, %26 : vector<8x32xi1>, vector<8x32xf32>
    %36 = vector.extract_strided_slice %12 {offsets = [16, 0], sizes = [8, 32], strides = [1, 1]} : vector<64x32xf32> to vector<8x32xf32>
    %cst_15 = arith.constant dense<0.000000e+00> : vector<8x32xf32>
    %37 = tpu.matmul %35, %16, %cst_15 {dimension_numbers = #tpu.dot_dimension_numbers<[1], [0], [0], [1], [0, 0, 1, 1], [], []>} : vector<8x32xf32>, vector<32x32xf32>, vector<8x32xf32> -> vector<8x32xf32>
    %38 = arith.addf %36, %37 : vector<8x32xf32>
    %39 = math.tanh %38 : vector<8x32xf32>
    %c2_i32 = arith.constant 2 : i32
    %40 = vector.broadcast %c2_i32 : i32 to vector<8x1xi32>
    %41 = arith.cmpi sgt, %15, %40 : vector<8x1xi32>
    %42 = vector.shape_cast %41 : vector<8x1xi1> to vector<8x1xi1>
    %43 = vector.broadcast %42 : vector<8x1xi1> to vector<8x32xi1>
    %44 = arith.select %43, %39, %35 : vector<8x32xi1>, vector<8x32xf32>
    %45 = vector.extract_strided_slice %12 {offsets = [24, 0], sizes = [8, 32], strides = [1, 1]} : vector<64x32xf32> to vector<8x32xf32>
    %cst_16 = arith.constant dense<0.000000e+00> : vector<8x32xf32>
    %46 = tpu.matmul %44, %16, %cst_16 {dimension_numbers = #tpu.dot_dimension_numbers<[1], [0], [0], [1], [0, 0, 1, 1], [], []>} : vector<8x32xf32>, vector<32x32xf32>, vector<8x32xf32> -> vector<8x32xf32>
    %47 = arith.addf %45, %46 : vector<8x32xf32>
    %48 = math.tanh %47 : vector<8x32xf32>
    %c3_i32 = arith.constant 3 : i32
    %49 = vector.broadcast %c3_i32 : i32 to vector<8x1xi32>
    %50 = arith.cmpi sgt, %15, %49 : vector<8x1xi32>
    %51 = vector.shape_cast %50 : vector<8x1xi1> to vector<8x1xi1>
    %52 = vector.broadcast %51 : vector<8x1xi1> to vector<8x32xi1>
    %53 = arith.select %52, %48, %44 : vector<8x32xi1>, vector<8x32xf32>
    %54 = vector.extract_strided_slice %12 {offsets = [32, 0], sizes = [8, 32], strides = [1, 1]} : vector<64x32xf32> to vector<8x32xf32>
    %cst_17 = arith.constant dense<0.000000e+00> : vector<8x32xf32>
    %55 = tpu.matmul %53, %16, %cst_17 {dimension_numbers = #tpu.dot_dimension_numbers<[1], [0], [0], [1], [0, 0, 1, 1], [], []>} : vector<8x32xf32>, vector<32x32xf32>, vector<8x32xf32> -> vector<8x32xf32>
    %56 = arith.addf %54, %55 : vector<8x32xf32>
    %57 = math.tanh %56 : vector<8x32xf32>
    %c4_i32 = arith.constant 4 : i32
    %58 = vector.broadcast %c4_i32 : i32 to vector<8x1xi32>
    %59 = arith.cmpi sgt, %15, %58 : vector<8x1xi32>
    %60 = vector.shape_cast %59 : vector<8x1xi1> to vector<8x1xi1>
    %61 = vector.broadcast %60 : vector<8x1xi1> to vector<8x32xi1>
    %62 = arith.select %61, %57, %53 : vector<8x32xi1>, vector<8x32xf32>
    %63 = vector.extract_strided_slice %12 {offsets = [40, 0], sizes = [8, 32], strides = [1, 1]} : vector<64x32xf32> to vector<8x32xf32>
    %cst_18 = arith.constant dense<0.000000e+00> : vector<8x32xf32>
    %64 = tpu.matmul %62, %16, %cst_18 {dimension_numbers = #tpu.dot_dimension_numbers<[1], [0], [0], [1], [0, 0, 1, 1], [], []>} : vector<8x32xf32>, vector<32x32xf32>, vector<8x32xf32> -> vector<8x32xf32>
    %65 = arith.addf %63, %64 : vector<8x32xf32>
    %66 = math.tanh %65 : vector<8x32xf32>
    %c5_i32 = arith.constant 5 : i32
    %67 = vector.broadcast %c5_i32 : i32 to vector<8x1xi32>
    %68 = arith.cmpi sgt, %15, %67 : vector<8x1xi32>
    %69 = vector.shape_cast %68 : vector<8x1xi1> to vector<8x1xi1>
    %70 = vector.broadcast %69 : vector<8x1xi1> to vector<8x32xi1>
    %71 = arith.select %70, %66, %62 : vector<8x32xi1>, vector<8x32xf32>
    %72 = vector.extract_strided_slice %12 {offsets = [48, 0], sizes = [8, 32], strides = [1, 1]} : vector<64x32xf32> to vector<8x32xf32>
    %cst_19 = arith.constant dense<0.000000e+00> : vector<8x32xf32>
    %73 = tpu.matmul %71, %16, %cst_19 {dimension_numbers = #tpu.dot_dimension_numbers<[1], [0], [0], [1], [0, 0, 1, 1], [], []>} : vector<8x32xf32>, vector<32x32xf32>, vector<8x32xf32> -> vector<8x32xf32>
    %74 = arith.addf %72, %73 : vector<8x32xf32>
    %75 = math.tanh %74 : vector<8x32xf32>
    %c6_i32 = arith.constant 6 : i32
    %76 = vector.broadcast %c6_i32 : i32 to vector<8x1xi32>
    %77 = arith.cmpi sgt, %15, %76 : vector<8x1xi32>
    %78 = vector.shape_cast %77 : vector<8x1xi1> to vector<8x1xi1>
    %79 = vector.broadcast %78 : vector<8x1xi1> to vector<8x32xi1>
    %80 = arith.select %79, %75, %71 : vector<8x32xi1>, vector<8x32xf32>
    %81 = vector.extract_strided_slice %12 {offsets = [56, 0], sizes = [8, 32], strides = [1, 1]} : vector<64x32xf32> to vector<8x32xf32>
    %cst_20 = arith.constant dense<0.000000e+00> : vector<8x32xf32>
    %82 = tpu.matmul %80, %16, %cst_20 {dimension_numbers = #tpu.dot_dimension_numbers<[1], [0], [0], [1], [0, 0, 1, 1], [], []>} : vector<8x32xf32>, vector<32x32xf32>, vector<8x32xf32> -> vector<8x32xf32>
    %83 = arith.addf %81, %82 : vector<8x32xf32>
    %84 = math.tanh %83 : vector<8x32xf32>
    %c7_i32 = arith.constant 7 : i32
    %85 = vector.broadcast %c7_i32 : i32 to vector<8x1xi32>
    %86 = arith.cmpi sgt, %15, %85 : vector<8x1xi32>
    %87 = vector.shape_cast %86 : vector<8x1xi1> to vector<8x1xi1>
    %88 = vector.broadcast %87 : vector<8x1xi1> to vector<8x32xi1>
    %89 = arith.select %88, %84, %80 : vector<8x32xi1>, vector<8x32xf32>
    %90 = vector.shape_cast %15 : vector<8x1xi32> to vector<1x8x1xi32>
    %cst_21 = arith.constant dense<-2147483648> : vector<1xi32>
    %91 = vector.multi_reduction <maxsi>, %90, %cst_21 [1, 2] : vector<1x8x1xi32> to vector<1xi32>
    %92 = vector.shape_cast %91 : vector<1xi32> to vector<1x1x1xi32>
    %93 = vector.extract %92[0, 0, 0] : i32 from vector<1x1x1xi32>
    %94 = vector.broadcast %93 : i32 to vector<8x1xi32>
    %95 = arith.cmpi eq, %15, %94 : vector<8x1xi32>
    %cst_22 = arith.constant 0.000000e+00 : f32
    %96 = vector.shape_cast %95 : vector<8x1xi1> to vector<8x1xi1>
    %97 = vector.broadcast %96 : vector<8x1xi1> to vector<8x32xi1>
    %98 = vector.broadcast %cst_22 : f32 to vector<8x32xf32>
    %99 = arith.select %97, %89, %98 : vector<8x32xi1>, vector<8x32xf32>
    %c0_23 = arith.constant 0 : index
    %c0_24 = arith.constant 0 : index
    %100 = vector.load %arg7[%c0_23, %c0_24] : memref<32x8xf32, #tpu.memory_space<vmem>>, vector<32x8xf32>
    %cst_25 = arith.constant dense<0.000000e+00> : vector<8x8xf32>
    %101 = tpu.matmul %99, %100, %cst_25 {dimension_numbers = #tpu.dot_dimension_numbers<[1], [0], [0], [1], [0, 0, 1, 1], [], []>} : vector<8x32xf32>, vector<32x8xf32>, vector<8x8xf32> -> vector<8x8xf32>
    %c0_26 = arith.constant 0 : index
    %c0_27 = arith.constant 0 : index
    %102 = vector.load %arg8[%c0_26, %c0_27] : memref<1x8xf32, #tpu.memory_space<vmem>>, vector<1x8xf32>
    %103 = vector.broadcast %102 : vector<1x8xf32> to vector<8x8xf32>
    %104 = arith.addf %101, %103 : vector<8x8xf32>
    %c0_28 = arith.constant 0 : index
    %c0_29 = arith.constant 0 : index
    %105 = vector.load %arg9[%c0_28, %c0_29] : memref<8x8xf32, #tpu.memory_space<vmem>>, vector<8x8xf32>
    tpu.vector_store %arg9[%c0_28, %c0_29], %104 {strides = array<i32>} : memref<8x8xf32, #tpu.memory_space<vmem>>, vector<8x8xf32>,
    return
  }
  func.func @transform_0(%arg0: i32) -> (i32, i32) {
    %c0_i32 = arith.constant 0 : i32
    %c0_i32_0 = arith.constant 0 : i32
    %c0_i32_1 = arith.constant 0 : i32
    return %c0_i32, %c0_i32_0 : i32, i32
  }
  func.func @transform_1(%arg0: i32) -> (i32, i32) {
    %c0_i32 = arith.constant 0 : i32
    %c0_i32_0 = arith.constant 0 : i32
    %c0_i32_1 = arith.constant 0 : i32
    return %c0_i32, %c0_i32_0 : i32, i32
  }
  func.func @transform_2(%arg0: i32) -> (i32, i32) {
    %c0_i32 = arith.constant 0 : i32
    %c0_i32_0 = arith.constant 0 : i32
    %c0_i32_1 = arith.constant 0 : i32
    return %c0_i32, %c0_i32_0 : i32, i32
  }
  func.func @transform_3(%arg0: i32) -> (i32, i32) {
    %c0_i32 = arith.constant 0 : i32
    %c0_i32_0 = arith.constant 0 : i32
    %c0_i32_1 = arith.constant 0 : i32
    return %c0_i32, %c0_i32_0 : i32, i32
  }
  func.func @transform_4(%arg0: i32) -> (i32, i32) {
    %c0_i32 = arith.constant 0 : i32
    %c0_i32_0 = arith.constant 0 : i32
    %c0_i32_1 = arith.constant 0 : i32
    return %c0_i32, %c0_i32_0 : i32, i32
  }
  func.func @transform_5(%arg0: i32) -> (i32, i32) {
    %c0_i32 = arith.constant 0 : i32
    %c0_i32_0 = arith.constant 0 : i32
    %c0_i32_1 = arith.constant 0 : i32
    return %c0_i32, %c0_i32_0 : i32, i32
  }
  func.func @transform_6(%arg0: i32) -> (i32, i32) {
    %c0_i32 = arith.constant 0 : i32
    %c0_i32_0 = arith.constant 0 : i32
    %c0_i32_1 = arith.constant 0 : i32
    return %c0_i32, %c0_i32_0 : i32, i32
  }
  func.func @transform_7(%arg0: i32) -> (i32, i32) {
    %c0_i32 = arith.constant 0 : i32
    %c0_i32_0 = arith.constant 0 : i32
    %c0_i32_1 = arith.constant 0 : i32
    return %c0_i32, %c0_i32_0 : i32, i32
  }
  func.func @transform_8(%arg0: i32) -> (i32, i32) {
    %c0_i32 = arith.constant 0 : i32
    %c0_i32_0 = arith.constant 0 : i32
    %c0_i32_1 = arith.constant 0 : i32
    return %c0_i32, %c0_i32_0 : i32, i32
  }
}

</mosaic_0001>

<llo_original>
// kernel: tpu_custom_call.1
$region0: #{tpu_custom_call.1}
  #allocation0 [shape = 'u32[]', space=smem, size = 0x4, offset = 0x4, fixed_abs, tag = 'smem constant byte address 0x4 - core index']
  #allocation1 [shape = 'u32[72,128]{1,0:T(1,128)}', space=vmem, size = 0x9000, scoped, tag = 'internal scratch']
  %s0 = inlined_call_operand.vmem [shape: s32[64,1], index: 0, kind: input, shape index: {}]
  %s1 = inlined_call_operand.vmem [shape: s32[8,1], index: 1, kind: input, shape index: {}]
  %s2 = inlined_call_operand.vmem [shape: f32[32,16], index: 2, kind: input, shape index: {}]
  %s3 = inlined_call_operand.vmem [shape: f32[16,32], index: 3, kind: input, shape index: {}]
  %s4 = inlined_call_operand.vmem [shape: f32[32,32], index: 4, kind: input, shape index: {}]
  %s5 = inlined_call_operand.vmem [shape: f32[1,32], index: 5, kind: input, shape index: {}]
  %s6 = inlined_call_operand.vmem [shape: f32[32,8], index: 6, kind: input, shape index: {}]
  %s7 = inlined_call_operand.vmem [shape: f32[1,8], index: 7, kind: input, shape index: {}]
  %s8 = inlined_call_operand.hbm [shape: f32[8,8], index: 8, kind: output, shape index: {}]
  %s9 = sld [smem:[#allocation0]]
  $region42: #{tpu_custom_call.1} parent=0
    _
  %s11 = ssub.s32 1, %s9
  %s12 = scalar_select 0, %s11, %s9
  $region1: #{tpu_custom_call.1} parent=0
    #allocation2 [shape = 'u8[4096]{0}', space=vmem, size = 0x1000, scoped, tag = 'output window, operand 0, single buffered']
    #allocation3 [shape = 's32[1]{0}', space=sflag, size = 0x4, scoped, tag = 'scoped memory for tpu_custom_call.1']
    %13 = vsyncpa [#allocation3], 0
    // Predicated region
    $region2: #{tpu_custom_call.1} parent=1 // pred_check
      _
    $region3: #{tpu_custom_call.1} parent=1 // pred_check_branch
      %15 = sbr.rel (0) target = $region5
    $region4: #{tpu_custom_call.1} parent=1 // pred_region
      _
    $region5: #{tpu_custom_call.1} parent=1 // pred_fallthru
      _
    // Predicated region
    $region6: #{tpu_custom_call.1} parent=1 // pred_check
      _
    $region7: #{tpu_custom_call.1} parent=1 // pred_check_branch
      %17 = sbr.rel (0) target = $region9
    $region8: #{tpu_custom_call.1} parent=1 // pred_region
      _
    $region9: #{tpu_custom_call.1} parent=1 // pred_fallthru
      _
    // Predicated region
    $region10: #{tpu_custom_call.1} parent=1 // pred_check
      _
    $region11: #{tpu_custom_call.1} parent=1 // pred_check_branch
      %19 = sbr.rel (0) target = $region13
    $region12: #{tpu_custom_call.1} parent=1 // pred_region
      _
    $region13: #{tpu_custom_call.1} parent=1 // pred_fallthru
      _
    // Predicated region
    $region14: #{tpu_custom_call.1} parent=1 // pred_check
      _
    $region15: #{tpu_custom_call.1} parent=1 // pred_check_branch
      %21 = sbr.rel (0) target = $region17
    $region16: #{tpu_custom_call.1} parent=1 // pred_region
      _
    $region17: #{tpu_custom_call.1} parent=1 // pred_fallthru
      _
    // Predicated region
    $region18: #{tpu_custom_call.1} parent=1 // pred_check
      _
    $region19: #{tpu_custom_call.1} parent=1 // pred_check_branch
      %23 = sbr.rel (0) target = $region21
    $region20: #{tpu_custom_call.1} parent=1 // pred_region
      _
    $region21: #{tpu_custom_call.1} parent=1 // pred_fallthru
      _
    // Predicated region
    $region22: #{tpu_custom_call.1} parent=1 // pred_check
      _
    $region23: #{tpu_custom_call.1} parent=1 // pred_check_branch
      %25 = sbr.rel (0) target = $region25
    $region24: #{tpu_custom_call.1} parent=1 // pred_region
      _
    $region25: #{tpu_custom_call.1} parent=1 // pred_fallthru
      _
    // Predicated region
    $region26: #{tpu_custom_call.1} parent=1 // pred_check
      _
    $region27: #{tpu_custom_call.1} parent=1 // pred_check_branch
      %27 = sbr.rel (0) target = $region29
    $region28: #{tpu_custom_call.1} parent=1 // pred_region
      _
    $region29: #{tpu_custom_call.1} parent=1 // pred_fallthru
      _
    // Predicated region
    $region30: #{tpu_custom_call.1} parent=1 // pred_check
      _
    $region31: #{tpu_custom_call.1} parent=1 // pred_check_branch
      %29 = sbr.rel (0) target = $region33
    $region32: #{tpu_custom_call.1} parent=1 // pred_region
      _
    $region33: #{tpu_custom_call.1} parent=1 // pred_fallthru
      _
    %v30 = vld [vmem:[%s2] sm:$0xff]
    %v31 = vld [vmem:[%s2 + $0x8] sm:$0xff]
    %v32 = vld [vmem:[%s2 + $0x10] sm:$0xff]
    %v33 = vld [vmem:[%s2 + $0x18] sm:$0xff]
    %v34 = vld [vmem:[%s3] sm:$0xff]
    %v35 = vld [vmem:[%s3 + $0x8] sm:$0xff]
    %vm36 = vcmask 130048
    %v38 = vsel %vm36, %v30, 0
    %v41 = vsel %vm36, %v31, 0
    %v44 = vsel %vm36, %v32, 0
    %v47 = vsel %vm36, %v33, 0
    %49 = vmatpush.msra.mxu0 0.0
    %50 = vmatpush.msra.mxu0 0.0
    %51 = vmatpush.msra.mxu0 0.0
    %52 = vmatpush.msra.mxu0 0.0
    %53 = vmatpush.msra.mxu0 0.0
    %54 = vmatpush.msra.mxu0 0.0
    %55 = vmatpush.msra.mxu0 0.0
    %56 = vmatpush.msra.mxu0 0.0
    %57 = vmatpush.msra.mxu0 0.0
    %58 = vmatpush.msra.mxu0 0.0
    %59 = vmatpush.msra.mxu0 0.0
    %60 = vmatpush.msra.mxu0 0.0
    %61 = vmatpush.msra.mxu0 0.0
    %62 = vmatpush.msra.mxu0 0.0
    %63 = vmatpush.msra.mxu0 %v35
    %64 = vmatpush.msra.mxu0 %v34
    %65 = vmatmul.f32.gmra.mxu0 %v38
    %v66 = vpop.f32.mrf.mxu0
    %v67 = vadd.f32 0.0, %v66
    %68 = vmatmul.f32.gmra.mxu0 %v41
    %v69 = vpop.f32.mrf.mxu0
    %v70 = vadd.f32 0.0, %v69
    %71 = vmatmul.f32.gmra.mxu0 %v44
    %v72 = vpop.f32.mrf.mxu0
    %v73 = vadd.f32 0.0, %v72
    %74 = vmatmul.f32.gmra.mxu0 %v47
    %v75 = vpop.f32.mrf.mxu0
    %v76 = vadd.f32 0.0, %v75
    %77 = vdwg.mxu0
    %v78 = vld [vmem:[%s0] sm:$0xff]
    %v79 = vld [vmem:[%s0 + $0x8] sm:$0xff]
    %v80 = vld [vmem:[%s0 + $0x10] sm:$0xff]
    %v81 = vld [vmem:[%s0 + $0x18] sm:$0xff]
    %v82 = vld [vmem:[%s0 + $0x20] sm:$0xff]
    %v83 = vld [vmem:[%s0 + $0x28] sm:$0xff]
    %v84 = vld [vmem:[%s0 + $0x30] sm:$0xff]
    %v85 = vld [vmem:[%s0 + $0x38] sm:$0xff]
    %v86 = vlaneseq
    %v87 = vand.u32 %v86, 127
    %88 = vset.pattern.permute.xlu0 0
    %89 = vperm.xlu0 %88, %v78
    %v90 = vpop.permute.xlu0 %89
    %91 = vset.pattern.permute.xlu0 0
    %92 = vperm.xlu0 %91, %v79
    %v93 = vpop.permute.xlu0 %92
    %94 = vset.pattern.permute.xlu0 0
    %95 = vperm.xlu0 %94, %v80
    %v96 = vpop.permute.xlu0 %95
    %97 = vset.pattern.permute.xlu0 0
    %98 = vperm.xlu0 %97, %v81
    %v99 = vpop.permute.xlu0 %98
    %100 = vset.pattern.permute.xlu0 0
    %101 = vperm.xlu0 %100, %v82
    %v102 = vpop.permute.xlu0 %101
    %103 = vset.pattern.permute.xlu0 0
    %104 = vperm.xlu0 %103, %v83
    %v105 = vpop.permute.xlu0 %104
    %106 = vset.pattern.permute.xlu0 0
    %107 = vperm.xlu0 %106, %v84
    %v108 = vpop.permute.xlu0 %107
    %109 = vset.pattern.permute.xlu0 0
    %110 = vperm.xlu0 %109, %v85
    %v111 = vpop.permute.xlu0 %110
    %vm112 = vcmp.eq.s32.totalorder %v90, %v87
    %vm113 = vcmp.eq.s32.totalorder %v93, %v87
    %vm114 = vcmp.eq.s32.totalorder %v96, %v87
    %vm115 = vcmp.eq.s32.totalorder %v99, %v87
    %vm116 = vcmp.eq.s32.totalorder %v102, %v87
    %vm117 = vcmp.eq.s32.totalorder %v105, %v87
    %vm118 = vcmp.eq.s32.totalorder %v108, %v87
    %vm119 = vcmp.eq.s32.totalorder %v111, %v87
    %v120 = vsel %vm112, 1, 0
    %v121 = vsel %vm113, 1, 0
    %v122 = vsel %vm114, 1, 0
    %v123 = vsel %vm115, 1, 0
    %v124 = vsel %vm116, 1, 0
    %v125 = vsel %vm117, 1, 0
    %v126 = vsel %vm118, 1, 0
    %v127 = vsel %vm119, 1, 0
    %v128 = vcvt.s32.f32 %v120
    %v129 = vcvt.s32.f32 %v121
    %v130 = vcvt.s32.f32 %v122
    %v131 = vcvt.s32.f32 %v123
    %v132 = vcvt.s32.f32 %v124
    %v133 = vcvt.s32.f32 %v125
    %v134 = vcvt.s32.f32 %v126
    %v135 = vcvt.s32.f32 %v127
    %v136 = vld [vmem:[%s5] sm:$0x1]
    %v138 = vperm.slane %v136, 0
    %vm140 = vcmask 261120
    %v142 = vsel %vm140, %v128, 0
    %v145 = vsel %vm140, %v129, 0
    %v148 = vsel %vm140, %v130, 0
    %v151 = vsel %vm140, %v131, 0
    %v154 = vsel %vm140, %v132, 0
    %v157 = vsel %vm140, %v133, 0
    %v160 = vsel %vm140, %v134, 0
    %v163 = vsel %vm140, %v135, 0
    %165 = vmatpush.msra.mxu0 0.0
    %166 = vmatpush.msra.mxu0 0.0
    %167 = vmatpush.msra.mxu0 0.0
    %168 = vmatpush.msra.mxu0 0.0
    %169 = vmatpush.msra.mxu0 0.0
    %170 = vmatpush.msra.mxu0 0.0
    %171 = vmatpush.msra.mxu0 0.0
    %172 = vmatpush.msra.mxu0 0.0
    %173 = vmatpush.msra.mxu0 0.0
    %174 = vmatpush.msra.mxu0 0.0
    %175 = vmatpush.msra.mxu0 0.0
    %176 = vmatpush.msra.mxu0 0.0
    %177 = vmatpush.msra.mxu0 %v76
    %178 = vmatpush.msra.mxu0 %v73
    %179 = vmatpush.msra.mxu0 %v70
    %180 = vmatpush.msra.mxu0 %v67
    %181 = vmatmul.f32.gmra.mxu0 %v142
    %v182 = vpop.f32.mrf.mxu0
    %v183 = vadd.f32 %v138, %v182
    %184 = vmatmul.f32.gmra.mxu0 %v145
    %v185 = vpop.f32.mrf.mxu0
    %v186 = vadd.f32 %v138, %v185
    %187 = vmatmul.f32.gmra.mxu0 %v148
    %v188 = vpop.f32.mrf.mxu0
    %v189 = vadd.f32 %v138, %v188
    %190 = vmatmul.f32.gmra.mxu0 %v151
    %v191 = vpop.f32.mrf.mxu0
    %v192 = vadd.f32 %v138, %v191
    %193 = vmatmul.f32.gmra.mxu0 %v154
    %v194 = vpop.f32.mrf.mxu0
    %v195 = vadd.f32 %v138, %v194
    %196 = vmatmul.f32.gmra.mxu0 %v157
    %v197 = vpop.f32.mrf.mxu0
    %v198 = vadd.f32 %v138, %v197
    %199 = vmatmul.f32.gmra.mxu0 %v160
    %v200 = vpop.f32.mrf.mxu0
    %v201 = vadd.f32 %v138, %v200
    %202 = vmatmul.f32.gmra.mxu0 %v163
    %v203 = vpop.f32.mrf.mxu0
    %v204 = vadd.f32 %v138, %v203
    %205 = vdwg.mxu0
    %v206 = vld [vmem:[%s1] sm:$0xff]
    %vm207 = vcmp.lt.s32.totalorder %v206, 8
    %v208 = vsel %vm207, %v206, 8
    %v209 = vld [vmem:[%s4] sm:$0xff]
    %v210 = vld [vmem:[%s4 + $0x8] sm:$0xff]
    %v211 = vld [vmem:[%s4 + $0x10] sm:$0xff]
    %v212 = vld [vmem:[%s4 + $0x18] sm:$0xff]
    %v214 = vsel %vm140, 0.0, 0
    %216 = vmatpush.msra.mxu0 0.0
    %217 = vmatpush.msra.mxu0 0.0
    %218 = vmatpush.msra.mxu0 0.0
    %219 = vmatpush.msra.mxu0 0.0
    %220 = vmatpush.msra.mxu0 0.0
    %221 = vmatpush.msra.mxu0 0.0
    %222 = vmatpush.msra.mxu0 0.0
    %223 = vmatpush.msra.mxu0 0.0
    %224 = vmatpush.msra.mxu0 0.0
    %225 = vmatpush.msra.mxu0 0.0
    %226 = vmatpush.msra.mxu0 0.0
    %227 = vmatpush.msra.mxu0 0.0
    %228 = vmatpush.msra.mxu0 %v212
    %229 = vmatpush.msra.mxu0 %v211
    %230 = vmatpush.msra.mxu0 %v210
    %231 = vmatpush.msra.mxu0 %v209
    %232 = vmatmul.f32.gmra.mxu0 %v214
    %v233 = vpop.f32.mrf.mxu0
    %v234 = vadd.f32 0.0, %v233
    %235 = vdwg.mxu0
    %v236 = vadd.f32 %v183, %v234
    %v237 = vtanh.pop %v236
    %vm238 = vcmp.gt.s32.totalorder %v208, 0
    %v239 = vsel %vm238, 1, 0
    %240 = vset.pattern.permute.xlu0 0
    %241 = vperm.xlu0 %240, %v239
    %v242 = vpop.permute.xlu0 %241
    %vm243 = vcmp.eq.s32.totalorder %v242, 1
    %v244 = vsel %vm243, %v237, 0.0
    %v246 = vsel %vm140, %v244, 0
    %248 = vmatpush.msra.mxu0 0.0
    %249 = vmatpush.msra.mxu0 0.0
    %250 = vmatpush.msra.mxu0 0.0
    %251 = vmatpush.msra.mxu0 0.0
    %252 = vmatpush.msra.mxu0 0.0
    %253 = vmatpush.msra.mxu0 0.0
    %254 = vmatpush.msra.mxu0 0.0
    %255 = vmatpush.msra.mxu0 0.0
    %256 = vmatpush.msra.mxu0 0.0
    %257 = vmatpush.msra.mxu0 0.0
    %258 = vmatpush.msra.mxu0 0.0
    %259 = vmatpush.msra.mxu0 0.0
    %260 = vmatpush.msra.mxu0 %v212
    %261 = vmatpush.msra.mxu0 %v211
    %262 = vmatpush.msra.mxu0 %v210
    %263 = vmatpush.msra.mxu0 %v209
    %264 = vmatmul.f32.gmra.mxu0 %v246
    %v265 = vpop.f32.mrf.mxu0
    %v266 = vadd.f32 0.0, %v265
    %267 = vdwg.mxu0
    %v268 = vadd.f32 %v186, %v266
    %v269 = vtanh.pop %v268
    %vm270 = vcmp.gt.s32.totalorder %v208, 1
    %v271 = vsel %vm270, 1, 0
    %272 = vset.pattern.permute.xlu0 0
    %273 = vperm.xlu0 %272, %v271
    %v274 = vpop.permute.xlu0 %273
    %vm275 = vcmp.eq.s32.totalorder %v274, 1
    %v276 = vsel %vm275, %v269, %v244
    %v278 = vsel %vm140, %v276, 0
    %280 = vmatpush.msra.mxu0 0.0
    %281 = vmatpush.msra.mxu0 0.0
    %282 = vmatpush.msra.mxu0 0.0
    %283 = vmatpush.msra.mxu0 0.0
    %284 = vmatpush.msra.mxu0 0.0
    %285 = vmatpush.msra.mxu0 0.0
    %286 = vmatpush.msra.mxu0 0.0
    %287 = vmatpush.msra.mxu0 0.0
    %288 = vmatpush.msra.mxu0 0.0
    %289 = vmatpush.msra.mxu0 0.0
    %290 = vmatpush.msra.mxu0 0.0
    %291 = vmatpush.msra.mxu0 0.0
    %292 = vmatpush.msra.mxu0 %v212
    %293 = vmatpush.msra.mxu0 %v211
    %294 = vmatpush.msra.mxu0 %v210
    %295 = vmatpush.msra.mxu0 %v209
    %296 = vmatmul.f32.gmra.mxu0 %v278
    %v297 = vpop.f32.mrf.mxu0
    %v298 = vadd.f32 0.0, %v297
    %299 = vdwg.mxu0
    %v300 = vadd.f32 %v189, %v298
    %v301 = vtanh.pop %v300
    %vm302 = vcmp.gt.s32.totalorder %v208, 2
    %v303 = vsel %vm302, 1, 0
    %304 = vset.pattern.permute.xlu0 0
    %305 = vperm.xlu0 %304, %v303
    %v306 = vpop.permute.xlu0 %305
    %vm307 = vcmp.eq.s32.totalorder %v306, 1
    %v308 = vsel %vm307, %v301, %v276
    %v310 = vsel %vm140, %v308, 0
    %312 = vmatpush.msra.mxu0 0.0
    %313 = vmatpush.msra.mxu0 0.0
    %314 = vmatpush.msra.mxu0 0.0
    %315 = vmatpush.msra.mxu0 0.0
    %316 = vmatpush.msra.mxu0 0.0
    %317 = vmatpush.msra.mxu0 0.0
    %318 = vmatpush.msra.mxu0 0.0
    %319 = vmatpush.msra.mxu0 0.0
    %320 = vmatpush.msra.mxu0 0.0
    %321 = vmatpush.msra.mxu0 0.0
    %322 = vmatpush.msra.mxu0 0.0
    %323 = vmatpush.msra.mxu0 0.0
    %324 = vmatpush.msra.mxu0 %v212
    %325 = vmatpush.msra.mxu0 %v211
    %326 = vmatpush.msra.mxu0 %v210
    %327 = vmatpush.msra.mxu0 %v209
    %328 = vmatmul.f32.gmra.mxu0 %v310
    %v329 = vpop.f32.mrf.mxu0
    %v330 = vadd.f32 0.0, %v329
    %331 = vdwg.mxu0
    %v332 = vadd.f32 %v192, %v330
    %v333 = vtanh.pop %v332
    %vm334 = vcmp.gt.s32.totalorder %v208, 3
    %v335 = vsel %vm334, 1, 0
    %336 = vset.pattern.permute.xlu0 0
    %337 = vperm.xlu0 %336, %v335
    %v338 = vpop.permute.xlu0 %337
    %vm339 = vcmp.eq.s32.totalorder %v338, 1
    %v340 = vsel %vm339, %v333, %v308
    %v342 = vsel %vm140, %v340, 0
    %344 = vmatpush.msra.mxu0 0.0
    %345 = vmatpush.msra.mxu0 0.0
    %346 = vmatpush.msra.mxu0 0.0
    %347 = vmatpush.msra.mxu0 0.0
    %348 = vmatpush.msra.mxu0 0.0
    %349 = vmatpush.msra.mxu0 0.0
    %350 = vmatpush.msra.mxu0 0.0
    %351 = vmatpush.msra.mxu0 0.0
    %352 = vmatpush.msra.mxu0 0.0
    %353 = vmatpush.msra.mxu0 0.0
    %354 = vmatpush.msra.mxu0 0.0
    %355 = vmatpush.msra.mxu0 0.0
    %356 = vmatpush.msra.mxu0 %v212
    %357 = vmatpush.msra.mxu0 %v211
    %358 = vmatpush.msra.mxu0 %v210
    %359 = vmatpush.msra.mxu0 %v209
    %360 = vmatmul.f32.gmra.mxu0 %v342
    %v361 = vpop.f32.mrf.mxu0
    %v362 = vadd.f32 0.0, %v361
    %363 = vdwg.mxu0
    %v364 = vadd.f32 %v195, %v362
    %v365 = vtanh.pop %v364
    %vm366 = vcmp.gt.s32.totalorder %v208, 4
    %v367 = vsel %vm366, 1, 0
    %368 = vset.pattern.permute.xlu0 0
    %369 = vperm.xlu0 %368, %v367
    %v370 = vpop.permute.xlu0 %369
    %vm371 = vcmp.eq.s32.totalorder %v370, 1
    %v372 = vsel %vm371, %v365, %v340
    %v374 = vsel %vm140, %v372, 0
    %376 = vmatpush.msra.mxu0 0.0
    %377 = vmatpush.msra.mxu0 0.0
    %378 = vmatpush.msra.mxu0 0.0
    %379 = vmatpush.msra.mxu0 0.0
    %380 = vmatpush.msra.mxu0 0.0
    %381 = vmatpush.msra.mxu0 0.0
    %382 = vmatpush.msra.mxu0 0.0
    %383 = vmatpush.msra.mxu0 0.0
    %384 = vmatpush.msra.mxu0 0.0
    %385 = vmatpush.msra.mxu0 0.0
    %386 = vmatpush.msra.mxu0 0.0
    %387 = vmatpush.msra.mxu0 0.0
    %388 = vmatpush.msra.mxu0 %v212
    %389 = vmatpush.msra.mxu0 %v211
    %390 = vmatpush.msra.mxu0 %v210
    %391 = vmatpush.msra.mxu0 %v209
    %392 = vmatmul.f32.gmra.mxu0 %v374
    %v393 = vpop.f32.mrf.mxu0
    %v394 = vadd.f32 0.0, %v393
    %395 = vdwg.mxu0
    %v396 = vadd.f32 %v198, %v394
    %v397 = vtanh.pop %v396
    %vm398 = vcmp.gt.s32.totalorder %v208, 5
    %v399 = vsel %vm398, 1, 0
    %400 = vset.pattern.permute.xlu0 0
    %401 = vperm.xlu0 %400, %v399
    %v402 = vpop.permute.xlu0 %401
    %vm403 = vcmp.eq.s32.totalorder %v402, 1
    %v404 = vsel %vm403, %v397, %v372
    %v406 = vsel %vm140, %v404, 0
    %408 = vmatpush.msra.mxu0 0.0
    %409 = vmatpush.msra.mxu0 0.0
    %410 = vmatpush.msra.mxu0 0.0
    %411 = vmatpush.msra.mxu0 0.0
    %412 = vmatpush.msra.mxu0 0.0
    %413 = vmatpush.msra.mxu0 0.0
    %414 = vmatpush.msra.mxu0 0.0
    %415 = vmatpush.msra.mxu0 0.0
    %416 = vmatpush.msra.mxu0 0.0
    %417 = vmatpush.msra.mxu0 0.0
    %418 = vmatpush.msra.mxu0 0.0
    %419 = vmatpush.msra.mxu0 0.0
    %420 = vmatpush.msra.mxu0 %v212
    %421 = vmatpush.msra.mxu0 %v211
    %422 = vmatpush.msra.mxu0 %v210
    %423 = vmatpush.msra.mxu0 %v209
    %424 = vmatmul.f32.gmra.mxu0 %v406
    %v425 = vpop.f32.mrf.mxu0
    %v426 = vadd.f32 0.0, %v425
    %427 = vdwg.mxu0
    %v428 = vadd.f32 %v201, %v426
    %v429 = vtanh.pop %v428
    %vm430 = vcmp.gt.s32.totalorder %v208, 6
    %v431 = vsel %vm430, 1, 0
    %432 = vset.pattern.permute.xlu0 0
    %433 = vperm.xlu0 %432, %v431
    %v434 = vpop.permute.xlu0 %433
    %vm435 = vcmp.eq.s32.totalorder %v434, 1
    %v436 = vsel %vm435, %v429, %v404
    %v438 = vsel %vm140, %v436, 0
    %440 = vmatpush.msra.mxu0 0.0
    %441 = vmatpush.msra.mxu0 0.0
    %442 = vmatpush.msra.mxu0 0.0
    %443 = vmatpush.msra.mxu0 0.0
    %444 = vmatpush.msra.mxu0 0.0
    %445 = vmatpush.msra.mxu0 0.0
    %446 = vmatpush.msra.mxu0 0.0
    %447 = vmatpush.msra.mxu0 0.0
    %448 = vmatpush.msra.mxu0 0.0
    %449 = vmatpush.msra.mxu0 0.0
    %450 = vmatpush.msra.mxu0 0.0
    %451 = vmatpush.msra.mxu0 0.0
    %452 = vmatpush.msra.mxu0 %v212
    %453 = vmatpush.msra.mxu0 %v211
    %454 = vmatpush.msra.mxu0 %v210
    %455 = vmatpush.msra.mxu0 %v209
    %456 = vmatmul.f32.gmra.mxu0 %v438
    %v457 = vpop.f32.mrf.mxu0
    %v458 = vadd.f32 0.0, %v457
    %459 = vdwg.mxu0
    %v460 = vadd.f32 %v204, %v458
    %v461 = vtanh.pop %v460
    %vm462 = vcmp.gt.s32.totalorder %v208, 7
    %v463 = vsel %vm462, 1, 0
    %464 = vset.pattern.permute.xlu0 0
    %465 = vperm.xlu0 %464, %v463
    %v466 = vpop.permute.xlu0 %465
    %vm467 = vcmp.eq.s32.totalorder %v466, 1
    %v468 = vsel %vm467, %v461, %v436
    %vm469 = vcmask 7168
    %v470 = vsel %vm469, %v208, 2147483648
    %v471 = vand.u32 %v470, 65535
    %v472 = vshra.s32 %v470, 16
    %v473 = vcvt.s32.f32 %v471
    %v474 = vcvt.s32.f32 %v472
    %475 = vmax.xlane.f32.xlu0 %v474
    %v476 = vpop.xlane.xlu0 %475
    %vm477 = vcmp.eq.f32.partialorder %v474, %v476
    %v478 = vsel %vm477, %v473, -inf
    %479 = vmax.xlane.f32.xlu0 %v478
    %v480 = vpop.xlane.xlu0 %479
    %v481 = vcvt.f32.s32 %v480
    %v482 = vcvt.f32.s32 %v476
    %v483 = vshll.u32 %v482, 16
    %v484 = vadd.s32 %v483, %v481
    %v485 = vrot.slane %v484, 4
    %vm486 = vcmp.gt.s32.totalorder %v484, %v485
    %v487 = vsel %vm486, %v484, %v485
    %v488 = vrot.slane %v487, 2
    %vm489 = vcmp.gt.s32.totalorder %v487, %v488
    %v490 = vsel %vm489, %v487, %v488
    %v491 = vrot.slane %v490, 1
    %vm492 = vcmp.gt.s32.totalorder %v490, %v491
    %v493 = vsel %vm492, %v490, %v491
    %s494 = vtos %v493
    %v495 = vstv %s494
    %vm496 = vcmp.eq.s32.totalorder %v208, %v495
    %v497 = vsel %vm496, 1, 0
    %498 = vset.pattern.permute.xlu0 0
    %499 = vperm.xlu0 %498, %v497
    %v500 = vpop.permute.xlu0 %499
    %vm501 = vcmp.eq.s32.totalorder %v500, 1
    %v502 = vsel %vm501, %v468, 0.0
    %v503 = vld [vmem:[%s6] sm:$0xff]
    %v504 = vld [vmem:[%s6 + $0x8] sm:$0xff]
    %v505 = vld [vmem:[%s6 + $0x10] sm:$0xff]
    %v506 = vld [vmem:[%s6 + $0x18] sm:$0xff]
    %v507 = vld [vmem:[%s7] sm:$0x1]
    %v509 = vperm.slane %v507, 0
    %v512 = vsel %vm140, %v502, 0
    %514 = vmatpush.msra.mxu0 0.0
    %515 = vmatpush.msra.mxu0 0.0
    %516 = vmatpush.msra.mxu0 0.0
    %517 = vmatpush.msra.mxu0 0.0
    %518 = vmatpush.msra.mxu0 0.0
    %519 = vmatpush.msra.mxu0 0.0
    %520 = vmatpush.msra.mxu0 0.0
    %521 = vmatpush.msra.mxu0 0.0
    %522 = vmatpush.msra.mxu0 0.0
    %523 = vmatpush.msra.mxu0 0.0
    %524 = vmatpush.msra.mxu0 0.0
    %525 = vmatpush.msra.mxu0 0.0
    %526 = vmatpush.msra.mxu0 %v506
    %527 = vmatpush.msra.mxu0 %v505
    %528 = vmatpush.msra.mxu0 %v504
    %529 = vmatpush.msra.mxu0 %v503
    %530 = vmatmul.f32.gmra.mxu0 %v512
    %v531 = vpop.f32.mrf.mxu0
    %v532 = vadd.f32 %v509, %v531
    %533 = vdwg.mxu0
    %vm534 = vcmask 64512
    %535 = vst.msk [vmem:[#allocation2] sm:$0xff] %vm534, %v532
    // Predicated region
    $region34: #{tpu_custom_call.1} parent=1 // pred_check
      _
    $region35: #{tpu_custom_call.1} parent=1 // pred_check_branch
      %537 = sbr.rel (0) target = $region37
    $region36: #{tpu_custom_call.1} parent=1 // pred_region
      %539 = vsyncadd [#allocation3], 0
      %s541 = sshll.u32 [#allocation2], 4
      %s542 = int_to_ptr.vmem [resolvable:$true] %s541
      %s543 = sshll.u32 %s8, 4
      %s544 = int_to_ptr.hbm [resolvable:$true] %s543
      %546 = dma.vmem_to_hbm [thread:$0]  %s542, 128, %s544, [#allocation3]
    $region37: #{tpu_custom_call.1} parent=1 // pred_fallthru
      _
    // Predicated region
    $region38: #{tpu_custom_call.1} parent=1 // pred_check
      _
    $region39: #{tpu_custom_call.1} parent=1 // pred_check_branch
      %548 = sbr.rel (0) target = $region41
    $region40: #{tpu_custom_call.1} parent=1 // pred_region
      %550 = dma.done [#allocation3], 128
    $region41: #{tpu_custom_call.1} parent=1 // pred_fallthru
      _
    %551 = vsyncpa [#allocation3], 1

</llo_original>
